<compile_context>
chip_gen: v7x
topology: tpu7x:2x2x1
jax: 0.10.0
libtpu: 0.0.40
codegen_flags: <defaults>
</compile_context>

<pallas_src>
import functools
import math

import jax
import jax.numpy as jnp
from jax.experimental import pallas as pl
from jax.experimental.pallas import tpu as pltpu

_LANES = 128      # vreg lane width
_SUBLANES = 8     # vreg sublane height (f32)
# Below this element count the fused jnp path is used (a standalone kernel
# forces logits to materialize in HBM and be re-read; XLA fusion is cheaper).
_PALLAS_MIN_ELEMS = 1 << 20
# Per grid step: one input block + one output block budget (the pipeline
# double-buffers this, so peak VMEM ~= 2x this value).
_VMEM_BLOCK_BUDGET = 4 * 1024 * 1024


def _round_up(x, m):
    return ((x + m - 1) // m) * m


def _threshold_to_logit(threshold):
    """Map a probability threshold to the equivalent logit-domain threshold."""
    t = float(threshold)  # NOTE: Python-float thresholds only (compile-time).
    if t <= 0.0:
        return -math.inf   # sigmoid(x) > 0   <=>  x > -inf (false for NaN/-inf)
    if t >= 1.0:
        return math.inf    # sigmoid(x) > 1 is never true
    # For t != 0.5 the decision boundary can differ by 1 ulp vs. the sigmoid
    # formulation for inputs exactly at the boundary; t == 0.5 -> 0.0, exact.
    return math.log(t / (1.0 - t))


def _pred_kernel(x_ref, o_ref, *, thr_logit):
    # Pure elementwise compare on the VPU, in the input's native dtype
    # (bf16 stays bf16).  NaN > thr is False, matching torch's
    # (sigmoid(NaN) > t) == False.
    x = x_ref[...]
    thr = jnp.asarray(thr_logit, dtype=x.dtype)
    o_ref[...] = (x > thr).astype(o_ref.dtype)


def _as_2d(logits):
    """Collapse to (rows, cols) without copying (contiguous-dim merge only)."""
    if logits.ndim >= 2:
        cols = int(logits.shape[-1])
        rows = logits.size // cols
        return logits.reshape(rows, cols)
    n = max(int(logits.size), 1)
    if n % _LANES == 0:
        return logits.reshape(n // _LANES, _LANES)   # lane-dense, still no pad
    return logits.reshape(1, n)


def _choose_block_rows(rows, cols, in_itemsize, out_itemsize, block_rows):
    """Pick a row-tile that (a) fits the VMEM budget, (b) gives >=2 grid steps
    when possible (v7x megacore), (c) respects the (8, full-dim) constraint."""
    cols_padded = _round_up(max(cols, 1), _LANES)        # VMEM lane padding
    bytes_per_row = cols_padded * (in_itemsize + out_itemsize)
    vmem_rows = max(_SUBLANES,
                    (_VMEM_BLOCK_BUDGET // max(bytes_per_row, 1))
                    // _SUBLANES * _SUBLANES)
    tb = min(int(block_rows), vmem_rows)
    # Prefer >= 2 grid steps so dimension_semantics=("parallel",) can shard
    # rows across both v7x TensorCores (no effect on single-TC v5e/v6e).
    half = _round_up(pl.cdiv(rows, 2), _SUBLANES)
    tb = min(tb, half)
    tb = max(_SUBLANES, _round_up(tb, _SUBLANES))
    if tb >= rows:
        tb = rows   # single full-extent block (legal even if rows % 8 != 0)
    return tb


def _compute_pred_pallas(logits, threshold, out_dtype, block_rows):
    orig_shape = logits.shape
    thr_logit = _threshold_to_logit(threshold)

    x2d = _as_2d(logits)
    rows, cols = int(x2d.shape[0]), int(x2d.shape[1])
    tb = _choose_block_rows(rows, cols,
                            jnp.dtype(x2d.dtype).itemsize,
                            jnp.dtype(out_dtype).itemsize,
                            block_rows)
    grid = (pl.cdiv(rows, tb),)

    out = pl.pallas_call(
        functools.partial(_pred_kernel, thr_logit=thr_logit),
        out_shape=jax.ShapeDtypeStruct((rows, cols), out_dtype),
        grid=grid,
        in_specs=[pl.BlockSpec((tb, cols), lambda i: (i, 0))],
        out_specs=pl.BlockSpec((tb, cols), lambda i: (i, 0)),
        compiler_params=pltpu.CompilerParams(
            dimension_semantics=("parallel",),
        ),
    )(x2d)

    return out.reshape(orig_shape)


def compute_pred(logits, threshold=0.5, *, out_dtype=jnp.float32,
                 block_rows=2048, force_pallas=False):
    """Pallas/JAX equivalent of MLECModel.compute_pred.

    logits: float array (any shape; conceptually [batch, num_labels]).
    returns: 0/1 array in `out_dtype`.  float32 default matches torch's
             `.float()`; pass jnp.int8 / jnp.bool_ to cut output HBM traffic
             by 4x when the consumer allows it.
    """
    logits = jnp.asarray(logits)
    if not jnp.issubdtype(logits.dtype, jnp.floating):
        logits = logits.astype(jnp.float32)
    total = int(logits.size)

    if total == 0 or (not force_pallas and total < _PALLAS_MIN_ELEMS):
        # Small / default path: let XLA fuse the 2-op predicate into the
        # producer of `logits` (e.g. the classifier-head matmul epilogue),
        # avoiding an extra HBM round-trip of the logits tensor.
        thr_logit = _threshold_to_logit(threshold)
        thr = jnp.asarray(thr_logit, dtype=logits.dtype)
        return (logits > thr).astype(out_dtype)

    return _compute_pred_pallas(logits, threshold, out_dtype, block_rows)


class MLECModelPallas:
    """JAX/Pallas port of MLECModel (forward is a no-op in the reference)."""

    def __init__(self, alpha=0.2, beta=0.1, name="MLECModel"):
        self.alpha = alpha
        self.beta = beta
        self.name = name
        # No learnable parameters in __init__ of the reference module.

    def forward(self, batch, device=None):
        # Reference forward is `pass` (abstract base for MLEC models).
        return None

    def compute_pred(self, logits, threshold=0.5, **kwargs):
        return compute_pred(logits, threshold, **kwargs)


if __name__ == "__main__":
    key = jax.random.PRNGKey(0)
    k1, k2, k3, k4 = jax.random.split(key, 4)

    model = MLECModelPallas(alpha=0.2, beta=0.1)
    _ = model.forward(batch=None)  # forward is a no-op, as in the reference.

    def ref_pred(x, t):
        return (jax.nn.sigmoid(x.astype(jnp.float32)) > t).astype(jnp.float32)

    # 1) Tiny demo shape (8 examples x 16 emotion labels): auto-dispatch uses
    #    the fused jnp path (a standalone kernel would be pure overhead here).
    logits_small = jax.random.normal(k1, (8, 16), dtype=jnp.float32) * 3.0
    y_small = jax.block_until_ready(model.compute_pred(logits_small, 0.5))
    assert y_small.shape == (8, 16) and y_small.dtype == jnp.float32
    assert bool(jnp.all(y_small == ref_pred(logits_small, 0.5)))

    # 2) Same tiny shape forced through the Pallas kernel: direct 2D tiling,
    #    single grid step, block (8, 16) with last dim = full dim (no padding,
    #    no output slice).
    y_small_pl = jax.block_until_ready(
        model.compute_pred(logits_small, 0.5, force_pallas=True))
    assert y_small_pl.shape == (8, 16) and y_small_pl.dtype == jnp.float32
    assert bool(jnp.all(y_small_pl == ref_pred(logits_small, 0.5)))

    # 3) Multi-step grid (rows=32, block_rows=8 -> 4 pipelined steps) with a
    #    non-0.5 threshold exercising the logit-domain rewrite; cols=96 < 128
    #    exercises the full-last-dim BlockSpec path.
    logits_med = jax.random.normal(k2, (32, 96), dtype=jnp.float32) * 3.0
    y_med = jax.block_until_ready(
        model.compute_pred(logits_med, 0.7, force_pallas=True, block_rows=8))
    assert y_med.shape == (32, 96) and y_med.dtype == jnp.float32
    assert bool(jnp.all(y_med == ref_pred(logits_med, 0.7)))

    # 4) int8 output (recommended when the consumer allows it): 4x less output
    #    HBM traffic; values are 0/1.
    logits_i8 = jax.random.normal(k3, (256, 128), dtype=jnp.float32) * 3.0
    y_i8 = jax.block_until_ready(
        model.compute_pred(logits_i8, 0.5, force_pallas=True,
                           out_dtype=jnp.int8, block_rows=64))
    assert y_i8.shape == (256, 128) and y_i8.dtype == jnp.int8
    assert bool(jnp.all(y_i8.astype(jnp.float32) == ref_pred(logits_i8, 0.5)))

    # 5) bf16 logits stream through natively (no f32 upcast of the input);
    #    t=0.5 keeps the comparison bit-exact vs. the sigmoid reference.
    logits_bf16 = (jax.random.normal(k4, (64, 128), dtype=jnp.float32)
                   * 3.0).astype(jnp.bfloat16)
    y_bf16 = jax.block_until_ready(
        model.compute_pred(logits_bf16, 0.5, force_pallas=True))
    assert y_bf16.shape == (64, 128) and y_bf16.dtype == jnp.float32
    assert bool(jnp.all(y_bf16 == ref_pred(logits_bf16, 0.5)))

    print("KERNEL_OK")
</pallas_src>

<mosaic_0001>
module attributes {stable_mosaic.version = 11 : i64} {
  func.func @_pred_kernel(%arg0: i32, %arg1: memref<8x16xf32, #tpu.memory_space<vmem>>, %arg2: memref<8x16xf32, #tpu.memory_space<vmem>>) attributes {dimension_semantics = [#tpu.dimension_semantics<parallel>], iteration_bounds = array<i64: 1>, scalar_prefetch = 0 : i64, scratch_operands = 0 : i64, tpu.core_type = #tpu.core_type<tc>, window_params = [{transform_indices = @transform_0, window_bounds = array<i64: 8, 16>}, {transform_indices = @transform_1, window_bounds = array<i64: 8, 16>}]} {
    %c0 = arith.constant 0 : index
    %c0_0 = arith.constant 0 : index
    %0 = vector.load %arg1[%c0, %c0_0] : memref<8x16xf32, #tpu.memory_space<vmem>>, vector<8x16xf32>
    %cst = arith.constant 0.000000e+00 : f32
    %1 = vector.broadcast %cst : f32 to vector<8x16xf32>
    %2 = arith.cmpf ogt, %0, %1 : vector<8x16xf32>
    %3 = arith.extui %2 : vector<8x16xi1> to vector<8x16xi32>
    %4 = arith.sitofp %3 : vector<8x16xi32> to vector<8x16xf32>
    %c0_1 = arith.constant 0 : index
    %c0_2 = arith.constant 0 : index
    %5 = vector.load %arg2[%c0_1, %c0_2] : memref<8x16xf32, #tpu.memory_space<vmem>>, vector<8x16xf32>
    tpu.vector_store %arg2[%c0_1, %c0_2], %4 {strides = array<i32>} : memref<8x16xf32, #tpu.memory_space<vmem>>, vector<8x16xf32>,
    return
  }
  func.func @transform_0(%arg0: i32) -> (i32, i32) {
    %c0_i32 = arith.constant 0 : i32
    %c0_i32_0 = arith.constant 0 : i32
    return %arg0, %c0_i32 : i32, i32
  }
  func.func @transform_1(%arg0: i32) -> (i32, i32) {
    %c0_i32 = arith.constant 0 : i32
    %c0_i32_0 = arith.constant 0 : i32
    return %arg0, %c0_i32 : i32, i32
  }
}

</mosaic_0001>

<llo_original>
// kernel: tpu_custom_call.1
$region0: #{tpu_custom_call.1}
  #allocation0 [shape = 'u32[]', space=smem, size = 0x4, offset = 0x4, fixed_abs, tag = 'smem constant byte address 0x4 - core index']
  #allocation1 [shape = 'u32[144,128]{1,0:T(1,128)}', space=vmem, size = 0x12000, scoped, tag = 'internal scratch']
  %s0 = inlined_call_operand.hbm [shape: f32[8,16], index: 0, kind: input, shape index: {}]
  %s1 = inlined_call_operand.hbm [shape: f32[8,16], index: 1, kind: output, shape index: {}]
  %s2 = sld [smem:[#allocation0]]
  $region18: #{tpu_custom_call.1} parent=0
    _
  %s4 = ssub.s32 1, %s2
  %s5 = scalar_select 0, %s4, %s2
  $region1: #{tpu_custom_call.1} parent=0
    #allocation2 [shape = 'u8[4096]{0}', space=vmem, size = 0x1000, scoped, tag = 'input window, operand 0, single buffered']
    #allocation3 [shape = 's32[1]{0}', space=sflag, size = 0x4, scoped, tag = 'scoped memory for tpu_custom_call.1']
    #allocation4 [shape = 's32[1]{0}', space=sflag, size = 0x4, scoped, tag = 'scoped memory for tpu_custom_call.1']
    #allocation5 [shape = 'u8[4096]{0}', space=vmem, size = 0x1000, scoped, tag = 'output window, operand 0, single buffered']
    %6 = vsyncpa [#allocation3], 0
    %7 = vsyncpa [#allocation4], 0
    // Predicated region
    $region2: #{tpu_custom_call.1} parent=1 // pred_check
      _
    $region3: #{tpu_custom_call.1} parent=1 // pred_check_branch
      %9 = sbr.rel (0) target = $region5
    $region4: #{tpu_custom_call.1} parent=1 // pred_region
      %s11 = ssub.s32 128, 128
      %12 = vsyncadd [#allocation3], %s11
      %s14 = sshll.u32 [#allocation2], 4
      %s15 = int_to_ptr.vmem [resolvable:$true] %s14
      %17 = dma.hbm_to_vmem [thread:$0]  %s0, 128, %s15, [#allocation3]
    $region5: #{tpu_custom_call.1} parent=1 // pred_fallthru
      _
    // Predicated region
    $region6: #{tpu_custom_call.1} parent=1 // pred_check
      _
    $region7: #{tpu_custom_call.1} parent=1 // pred_check_branch
      %19 = sbr.rel (0) target = $region9
    $region8: #{tpu_custom_call.1} parent=1 // pred_region
      %20 = dma.done [#allocation3], 128
    $region9: #{tpu_custom_call.1} parent=1 // pred_fallthru
      _
    %v21 = vld [vmem:[#allocation2] sm:$0xff]
    %vm22 = vcmp.gt.f32.partialorder %v21, 0.0
    %v23 = vsel %vm22, 1, 0
    %v24 = vcvt.s32.f32 %v23
    %vm25 = vcmask 130048
    %26 = vst.msk [vmem:[#allocation5] sm:$0xff] %vm25, %v24
    // Predicated region
    $region10: #{tpu_custom_call.1} parent=1 // pred_check
      _
    $region11: #{tpu_custom_call.1} parent=1 // pred_check_branch
      %28 = sbr.rel (0) target = $region13
    $region12: #{tpu_custom_call.1} parent=1 // pred_region
      %s30 = ssub.s32 128, 128
      %31 = vsyncadd [#allocation4], %s30
      %s33 = sshll.u32 [#allocation5], 4
      %s34 = int_to_ptr.vmem [resolvable:$true] %s33
      %36 = dma.vmem_to_hbm [thread:$0]  %s34, 128, %s1, [#allocation4]
    $region13: #{tpu_custom_call.1} parent=1 // pred_fallthru
      _
    // Predicated region
    $region14: #{tpu_custom_call.1} parent=1 // pred_check
      _
    $region15: #{tpu_custom_call.1} parent=1 // pred_check_branch
      %38 = sbr.rel (0) target = $region17
    $region16: #{tpu_custom_call.1} parent=1 // pred_region
      %39 = dma.done [#allocation4], 128
    $region17: #{tpu_custom_call.1} parent=1 // pred_fallthru
      _
    %40 = vsyncpa [#allocation3], 1
    %41 = vsyncpa [#allocation4], 1

</llo_original>
